<compile_context>
chip_gen: v7x
topology: tpu7x:2x2x1
jax: 0.10.0
libtpu: 0.0.40
codegen_flags: <defaults>
</compile_context>

<pallas_src>
import functools

import jax
import jax.numpy as jnp
from jax.experimental import pallas as pl
from jax.experimental.pallas import tpu as pltpu


def _round_up(x, m):
    return (x + m - 1) // m * m


# -----------------------------------------------------------------------------
# Pallas kernels: tiled matmul + bias + activation (+ optional fused residual)
# -----------------------------------------------------------------------------
def _mm_bias_act_kernel(x_ref, w_ref, b_ref, o_ref, acc_ref, *, act):
    k = pl.program_id(2)

    @pl.when(k == 0)
    def _():
        acc_ref[...] = jnp.zeros_like(acc_ref)

    acc_ref[...] += jnp.dot(
        x_ref[...], w_ref[...], preferred_element_type=jnp.float32
    )

    @pl.when(k == pl.num_programs(2) - 1)
    def _():
        r = acc_ref[...] + b_ref[...]
        if act == "silu":
            r = r * jax.nn.sigmoid(r)  # exp/logistic runs on the EUP slot
        o_ref[...] = r.astype(o_ref.dtype)


def _mm_bias_act_skip_kernel(x_ref, w_ref, b_ref, s_ref, o_ref, acc_ref, *, act):
    k = pl.program_id(2)

    @pl.when(k == 0)
    def _():
        acc_ref[...] = jnp.zeros_like(acc_ref)

    acc_ref[...] += jnp.dot(
        x_ref[...], w_ref[...], preferred_element_type=jnp.float32
    )

    @pl.when(k == pl.num_programs(2) - 1)
    def _():
        r = acc_ref[...] + b_ref[...]
        if act == "silu":
            r = r * jax.nn.sigmoid(r)
        # fused residual add (skip is added after the activation, matching y1 + act(conv))
        o_ref[...] = (r + s_ref[...].astype(jnp.float32)).astype(o_ref.dtype)


def pallas_matmul_bias_act(cols, packed, act="none", skip=None):
    """cols: (M, K) activations; packed: pre-packed conv params. Returns (M, Cout) f32."""
    m, kdim = cols.shape
    assert kdim == packed["k"], (kdim, packed["k"])
    k_pad = packed["k_pad"]
    n_pad = packed["n_pad"]
    cout = packed["cout"]

    # Generation-friendly tiles: 256 on the MXU contraction/output axes when the
    # padded dims allow, lane-dense (multiples of 128) otherwise. Small enough to
    # double-buffer comfortably inside v7x's 64 MiB VMEM.
    tm = 256 if m >= 256 else _round_up(m, 16)
    m_pad = _round_up(m, tm)
    tn = 256 if n_pad % 256 == 0 else 128
    tk = 256 if k_pad % 256 == 0 else 128

    x = cols.astype(jnp.bfloat16)
    if (m_pad != m) or (k_pad != kdim):
        x = jnp.pad(x, ((0, m_pad - m), (0, k_pad - kdim)))

    grid = (m_pad // tm, n_pad // tn, k_pad // tk)

    in_specs = [
        pl.BlockSpec((tm, tk), lambda i, j, k: (i, k)),
        pl.BlockSpec((tk, tn), lambda i, j, k: (k, j)),
        pl.BlockSpec((1, tn), lambda i, j, k: (0, j)),
    ]
    args = [x, packed["w"], packed["b"]]

    if skip is None:
        kernel = functools.partial(_mm_bias_act_kernel, act=act)
    else:
        kernel = functools.partial(_mm_bias_act_skip_kernel, act=act)
        s = skip.astype(jnp.float32)
        if (m_pad != m) or (n_pad != cout):
            s = jnp.pad(s, ((0, m_pad - m), (0, n_pad - cout)))
        in_specs.append(pl.BlockSpec((tm, tn), lambda i, j, k: (i, j)))
        args.append(s)

    out = pl.pallas_call(
        kernel,
        out_shape=jax.ShapeDtypeStruct((m_pad, n_pad), jnp.float32),
        grid_spec=pltpu.PrefetchScalarGridSpec(
            num_scalar_prefetch=0,
            grid=grid,
            in_specs=in_specs,
            out_specs=pl.BlockSpec((tm, tn), lambda i, j, k: (i, j)),
            scratch_shapes=[pltpu.VMEM((tm, tn), jnp.float32)],
        ),
        compiler_params=pltpu.CompilerParams(
            dimension_semantics=("parallel", "parallel", "arbitrary"),
            vmem_limit_bytes=32 * 1024 * 1024,
        ),
    )(*args)
    return out[:m, :cout]


# -----------------------------------------------------------------------------
# Convolution = (im2col / reshape) glue + Pallas matmul kernel
# -----------------------------------------------------------------------------
def _im2col(x_nhwc, ksize, stride, pad):
    n, h, w, c = x_nhwc.shape
    xp = jnp.pad(x_nhwc, ((0, 0), (pad, pad), (pad, pad), (0, 0)))
    ho = (h + 2 * pad - ksize) // stride + 1
    wo = (w + 2 * pad - ksize) // stride + 1
    cols = []
    for kh in range(ksize):
        for kw in range(ksize):
            cols.append(xp[:, kh:kh + stride * ho:stride, kw:kw + stride * wo:stride, :])
    cols = jnp.concatenate(cols, axis=-1)  # (N, Ho, Wo, k*k*C)
    return cols.reshape(n * ho * wo, ksize * ksize * c), ho, wo


def conv2d(x_nhwc, p, stride=1, act="silu", skip=None):
    """Conv with pre-packed weights; 'same'-style padding k//2; optional fused residual."""
    n, h, w, c = x_nhwc.shape
    ksize = p["ksize"]
    if ksize == 1 and stride == 1:
        cols, ho, wo = x_nhwc.reshape(n * h * w, c), h, w  # 1x1: no patch expansion
    else:
        # TODO(synk): fold the 3x3 patch extraction into the Pallas pipeline
        # (implicit GEMM over shifted NHWC tiles) to avoid the k*k-inflated
        # im2col round-trip through HBM; currently only the K grid axis limits
        # how much of it is resident in VMEM at once.
        cols, ho, wo = _im2col(x_nhwc, ksize, stride, ksize // 2)
    skip_flat = None if skip is None else skip.reshape(n * ho * wo, p["cout"])
    out = pallas_matmul_bias_act(cols, p, act=act, skip=skip_flat)
    return out.reshape(n, ho, wo, p["cout"])


# -----------------------------------------------------------------------------
# Deterministic parameter initialization (weights pre-packed for the kernel)
# -----------------------------------------------------------------------------
def _pack_conv(w_oihw, b):
    cout, cin, kh, kw = w_oihw.shape
    kdim = kh * kw * cin
    k_pad = _round_up(kdim, 128)
    n_pad = _round_up(cout, 128)
    # reorder to im2col ordering (kh, kw, cin) -> K axis, pad K / Cout to lane multiples
    w_mat = jnp.transpose(w_oihw, (2, 3, 1, 0)).reshape(kdim, cout)
    w_mat = jnp.pad(w_mat, ((0, k_pad - kdim), (0, n_pad - cout))).astype(jnp.bfloat16)
    b_row = jnp.pad(b.reshape(1, cout).astype(jnp.float32), ((0, 0), (0, n_pad - cout)))
    return {
        "w": w_mat, "b": b_row, "ksize": kh, "cin": cin, "cout": cout,
        "k": kdim, "k_pad": k_pad, "n_pad": n_pad,
    }


class ParamFactory:
    def __init__(self, seed=0):
        self.key = jax.random.PRNGKey(seed)

    def conv(self, cin, cout, ksize):
        self.key, k1, k2 = jax.random.split(self.key, 3)
        fan_in = cin * ksize * ksize
        w = jax.random.normal(k1, (cout, cin, ksize, ksize), jnp.float32) / jnp.sqrt(
            jnp.float32(fan_in)
        )
        b = jax.random.normal(k2, (cout,), jnp.float32) * 0.01
        return _pack_conv(w, b)


# -----------------------------------------------------------------------------
# CSPDarknet backbone
# -----------------------------------------------------------------------------
def init_backbone(pf, in_channels, channels, blocks):
    params = {"stem": pf.conv(in_channels, channels[0], 3), "stages": []}
    for i in range(len(blocks)):
        cin, cout = channels[i], channels[i + 1]
        hidden = cout // 2
        stage = {
            "down": pf.conv(cin, cout, 3),
            "csp_conv1": pf.conv(cout, hidden, 1),
            "csp_conv2": pf.conv(cout, hidden, 1),
            "bottlenecks": [
                {"cv1": pf.conv(hidden, hidden, 1), "cv2": pf.conv(hidden, hidden, 3)}
                for _ in range(blocks[i])
            ],
            "csp_out": pf.conv(2 * hidden, cout, 1),
        }
        params["stages"].append(stage)
    return params


def _csp_forward(x, stage):
    y1 = conv2d(x, stage["csp_conv1"], act="silu")
    y2 = conv2d(x, stage["csp_conv2"], act="silu")
    for bt in stage["bottlenecks"]:
        h = conv2d(y1, bt["cv1"], act="silu")
        y1 = conv2d(h, bt["cv2"], act="silu", skip=y1)  # residual fused into epilogue
    y = jnp.concatenate([y1, y2], axis=-1)
    return conv2d(y, stage["csp_out"], act="silu")


def backbone_forward(x, params, stage_indices):
    x = conv2d(x, params["stem"], act="silu")
    feats = []
    for i, stage in enumerate(params["stages"]):
        x = conv2d(x, stage["down"], stride=2, act="silu")
        x = _csp_forward(x, stage)
        if i in stage_indices:
            feats.append(x)
    return feats


# -----------------------------------------------------------------------------
# FPN neck
# -----------------------------------------------------------------------------
def init_fpn(pf, in_channels_list, out_channels):
    return {
        "lateral": [pf.conv(c, out_channels, 1) for c in in_channels_list],
        "smooth": [pf.conv(out_channels, out_channels, 3) for _ in in_channels_list],
    }


def _upsample2x_nearest(x):
    n, h, w, c = x.shape
    y = jnp.broadcast_to(x[:, :, None, :, None, :], (n, h, 2, w, 2, c))
    return y.reshape(n, 2 * h, 2 * w, c)


def fpn_forward(feats, params):
    laterals = [conv2d(f, p, act="none") for f, p in zip(feats, params["lateral"])]
    for i in range(len(laterals) - 2, -1, -1):
        # TODO(synk): fuse upsample + lateral add into the smooth-conv Pallas epilogue.
        laterals[i] = laterals[i] + _upsample2x_nearest(laterals[i + 1])
    return [conv2d(l, p, act="none") for l, p in zip(laterals, params["smooth"])]


# -----------------------------------------------------------------------------
# Detection head (shared weights -> all pyramid levels batched into one call each)
# -----------------------------------------------------------------------------
def init_head(pf, in_channels, num_classes, num_anchors):
    return {
        "conv": pf.conv(in_channels, in_channels, 3),
        "pred": pf.conv(in_channels, num_anchors * (5 + num_classes), 1),
    }


def head_forward_batched(feats, params):
    cols_list, shapes = [], []
    for f in feats:
        cols, ho, wo = _im2col(f, 3, 1, 1)
        cols_list.append(cols)
        shapes.append((f.shape[0], ho, wo))
    cols = jnp.concatenate(cols_list, axis=0)                       # stack levels along M
    hid = pallas_matmul_bias_act(cols, params["conv"], act="silu")  # (Mtot, Cmid)
    pred = pallas_matmul_bias_act(hid, params["pred"], act="none")  # (Mtot, Cpred)
    outs, off = [], 0
    for (n, ho, wo) in shapes:
        m = n * ho * wo
        outs.append(pred[off:off + m].reshape(n, ho, wo, params["pred"]["cout"]))
        off += m
    return outs


# -----------------------------------------------------------------------------
# DetectionModel
# -----------------------------------------------------------------------------
class DetectionModel:
    def __init__(
        self,
        in_channels=3,
        backbone_channels=(32, 64, 128, 256, 512, 1024),
        backbone_blocks=(1, 2, 8, 8, 4),
        fpn_out_channels=256,
        num_classes=1,
        num_anchors=3,
        seed=0,
    ):
        pf = ParamFactory(seed)
        self.stage_indices = (2, 3, 4)
        self.backbone_params = init_backbone(
            pf, in_channels, backbone_channels, backbone_blocks
        )
        backbone_out_channels = [backbone_channels[i + 1] for i in self.stage_indices]
        self.fpn_params = init_fpn(pf, backbone_out_channels, fpn_out_channels)
        self.head_params = init_head(pf, fpn_out_channels, num_classes, num_anchors)

    def __call__(self, x_nchw):
        x = jnp.transpose(x_nchw, (0, 2, 3, 1))  # NCHW -> NHWC (internal layout)
        feats = backbone_forward(x, self.backbone_params, self.stage_indices)
        fpn_feats = fpn_forward(feats, self.fpn_params)
        outputs = head_forward_batched(fpn_feats, self.head_params)
        # back to PyTorch NCHW convention
        return [jnp.transpose(o, (0, 3, 1, 2)) for o in outputs]


# -----------------------------------------------------------------------------
if __name__ == "__main__":
    # Small but structurally faithful configuration (5 CSP stages, strides 8/16/32).
    model = DetectionModel(
        in_channels=3,
        backbone_channels=(8, 16, 32, 32, 64, 64),
        backbone_blocks=(1, 1, 1, 1, 1),
        fpn_out_channels=32,
        num_classes=1,
        num_anchors=3,
        seed=0,
    )

    key = jax.random.PRNGKey(0)
    x = jax.random.normal(key, (2, 3, 32, 32), jnp.float32)  # NCHW, like PyTorch

    outputs = model(x)
    for o in outputs:
        jax.block_until_ready(o)

    # Expected shapes: (2, 18, 4, 4), (2, 18, 2, 2), (2, 18, 1, 1)
    assert len(outputs) == 3
    assert outputs[0].shape == (2, 18, 4, 4)
    assert outputs[1].shape == (2, 18, 2, 2)
    assert outputs[2].shape == (2, 18, 1, 1)

    print("KERNEL_OK")
</pallas_src>

<mosaic_0001>
module attributes {stable_mosaic.version = 11 : i64} {
  func.func @_mm_bias_act_kernel(%arg0: i32, %arg1: i32, %arg2: i32, %arg3: memref<256x128xbf16, #tpu.memory_space<vmem>>, %arg4: memref<128x128xbf16, #tpu.memory_space<vmem>>, %arg5: memref<1x128xf32, #tpu.memory_space<vmem>>, %arg6: memref<256x128xf32, #tpu.memory_space<vmem>>, %arg7: memref<256x128xf32, #tpu.memory_space<vmem>>) attributes {dimension_semantics = [#tpu.dimension_semantics<parallel>, #tpu.dimension_semantics<parallel>, #tpu.dimension_semantics<arbitrary>], iteration_bounds = array<i64: 8, 1, 1>, scalar_prefetch = 0 : i64, scratch_operands = 1 : i64, tpu.core_type = #tpu.core_type<tc>, window_params = [{transform_indices = @transform_0, window_bounds = array<i64: 256, 128>}, {transform_indices = @transform_1, window_bounds = array<i64: 128, 128>}, {transform_indices = @transform_2, window_bounds = array<i64: 1, 128>}, {transform_indices = @transform_3, window_bounds = array<i64: 256, 128>}]} {
    %c0_i32 = arith.constant 0 : i32
    %0 = arith.cmpi eq, %arg2, %c0_i32 : i32
    %1 = arith.extui %0 : i1 to i32
    %c0_i32_0 = arith.constant 0 : i32
    %2 = arith.cmpi ne, %1, %c0_i32_0 : i32
    scf.if %2 {
      %cst_10 = arith.constant 0.000000e+00 : f32
      %12 = vector.broadcast %cst_10 : f32 to vector<256x128xf32>
      %c0_11 = arith.constant 0 : index
      %c0_12 = arith.constant 0 : index
      %13 = vector.load %arg7[%c0_11, %c0_12] : memref<256x128xf32, #tpu.memory_space<vmem>>, vector<256x128xf32>
      tpu.vector_store %arg7[%c0_11, %c0_12], %12 {strides = array<i32>} : memref<256x128xf32, #tpu.memory_space<vmem>>, vector<256x128xf32>,
    } else {
    }
    %c0 = arith.constant 0 : index
    %c0_1 = arith.constant 0 : index
    %3 = vector.load %arg7[%c0, %c0_1] : memref<256x128xf32, #tpu.memory_space<vmem>>, vector<256x128xf32>
    %c0_2 = arith.constant 0 : index
    %c0_3 = arith.constant 0 : index
    %4 = vector.load %arg3[%c0_2, %c0_3] : memref<256x128xbf16, #tpu.memory_space<vmem>>, vector<256x128xbf16>
    %c0_4 = arith.constant 0 : index
    %c0_5 = arith.constant 0 : index
    %5 = vector.load %arg4[%c0_4, %c0_5] : memref<128x128xbf16, #tpu.memory_space<vmem>>, vector<128x128xbf16>
    %cst = arith.constant dense<0.000000e+00> : vector<256x128xf32>
    %6 = tpu.matmul %4, %5, %cst {dimension_numbers = #tpu.dot_dimension_numbers<[1], [0], [0], [1], [0, 0, 1, 1], [], []>} : vector<256x128xbf16>, vector<128x128xbf16>, vector<256x128xf32> -> vector<256x128xf32>
    %7 = arith.addf %3, %6 : vector<256x128xf32>
    %c0_6 = arith.constant 0 : index
    %c0_7 = arith.constant 0 : index
    %8 = vector.load %arg7[%c0_6, %c0_7] : memref<256x128xf32, #tpu.memory_space<vmem>>, vector<256x128xf32>
    tpu.vector_store %arg7[%c0_6, %c0_7], %7 {strides = array<i32>} : memref<256x128xf32, #tpu.memory_space<vmem>>, vector<256x128xf32>,
    %c0_i32_8 = arith.constant 0 : i32
    %9 = arith.cmpi eq, %arg2, %c0_i32_8 : i32
    %10 = arith.extui %9 : i1 to i32
    %c0_i32_9 = arith.constant 0 : i32
    %11 = arith.cmpi ne, %10, %c0_i32_9 : i32
    scf.if %11 {
      %c0_10 = arith.constant 0 : index
      %c0_11 = arith.constant 0 : index
      %12 = vector.load %arg7[%c0_10, %c0_11] : memref<256x128xf32, #tpu.memory_space<vmem>>, vector<256x128xf32>
      %c0_12 = arith.constant 0 : index
      %c0_13 = arith.constant 0 : index
      %13 = vector.load %arg5[%c0_12, %c0_13] : memref<1x128xf32, #tpu.memory_space<vmem>>, vector<1x128xf32>
      %14 = vector.broadcast %13 : vector<1x128xf32> to vector<256x128xf32>
      %15 = arith.addf %12, %14 : vector<256x128xf32>
      %16 = arith.negf %15 : vector<256x128xf32>
      %17 = math.exp %16 : vector<256x128xf32>
      %cst_14 = arith.constant 1.000000e+00 : f32
      %18 = vector.broadcast %cst_14 : f32 to vector<256x128xf32>
      %19 = arith.addf %18, %17 : vector<256x128xf32>
      %20 = arith.divf %18, %19 : vector<256x128xf32>
      %21 = arith.mulf %15, %20 : vector<256x128xf32>
      %c0_15 = arith.constant 0 : index
      %c0_16 = arith.constant 0 : index
      %22 = vector.load %arg6[%c0_15, %c0_16] : memref<256x128xf32, #tpu.memory_space<vmem>>, vector<256x128xf32>
      tpu.vector_store %arg6[%c0_15, %c0_16], %21 {strides = array<i32>} : memref<256x128xf32, #tpu.memory_space<vmem>>, vector<256x128xf32>,
    } else {
    }
    return
  }
  func.func @transform_0(%arg0: i32, %arg1: i32, %arg2: i32) -> (i32, i32) {
    %c0_i32 = arith.constant 0 : i32
    return %arg0, %arg2 : i32, i32
  }
  func.func @transform_1(%arg0: i32, %arg1: i32, %arg2: i32) -> (i32, i32) {
    %c0_i32 = arith.constant 0 : i32
    return %arg2, %arg1 : i32, i32
  }
  func.func @transform_2(%arg0: i32, %arg1: i32, %arg2: i32) -> (i32, i32) {
    %c0_i32 = arith.constant 0 : i32
    %c0_i32_0 = arith.constant 0 : i32
    return %c0_i32, %arg1 : i32, i32
  }
  func.func @transform_3(%arg0: i32, %arg1: i32, %arg2: i32) -> (i32, i32) {
    %c0_i32 = arith.constant 0 : i32
    return %arg0, %arg1 : i32, i32
  }
}

</mosaic_0001>

<llo_original>
// kernel: tpu_custom_call.1
$region0: #{tpu_custom_call.1}
  #allocation0 [shape = 'u32[]', space=smem, size = 0x4, offset = 0x4, fixed_abs, tag = 'smem constant byte address 0x4 - core index']
  #allocation1 [shape = 'u32[144,128]{1,0:T(1,128)}', space=vmem, size = 0x12000, scoped, tag = 'internal scratch']
  #allocation2 [shape = 'f32[256,128]{1,0:T(8,128)}', space=vmem, size = 0x20000, scoped, tag = 'scratch operand']
  %s0 = inlined_call_operand.hbm [shape: bf16[2048,128], index: 0, kind: input, shape index: {}]
  %s1 = inlined_call_operand.hbm [shape: bf16[128,128], index: 1, kind: input, shape index: {}]
  %s2 = inlined_call_operand.vmem [shape: f32[1,128], index: 2, kind: input, shape index: {}]
  %s3 = inlined_call_operand.hbm [shape: f32[2048,128], index: 3, kind: output, shape index: {}]
  %s4 = sld [smem:[#allocation0]]
  $region61: #{tpu_custom_call.1} parent=0
    _
  %s6 = ssub.s32 1, %s4
  %s7 = scalar_select 0, %s6, %s4
  $region1: #{tpu_custom_call.1} parent=0
    #allocation3 [shape = 'u8[131072]{0}', space=vmem, size = 0x20000, scoped, tag = 'input window, operand 0']
    #allocation4 [shape = 's32[2]{0}', space=sflag, size = 0x8, scoped, tag = 'scoped memory for tpu_custom_call.1']
    #allocation5 [shape = 's32[2]{0}', space=sflag, size = 0x8, scoped, tag = 'scoped memory for tpu_custom_call.1']
    #allocation6 [shape = 'u8[32768]{0}', space=vmem, size = 0x8000, scoped, tag = 'input window, operand 1, single buffered']
    #allocation7 [shape = 's32[1]{0}', space=sflag, size = 0x4, scoped, tag = 'scoped memory for tpu_custom_call.1']
    #allocation8 [shape = 'u8[262144]{0}', space=vmem, size = 0x40000, scoped, tag = 'output window, operand 0']
    %8 = vsyncpa [#allocation4], 0
    %s9 = scalar_lea.sflag [#allocation4], 1
    %10 = vsyncpa %s9, 0
    %11 = vsyncpa [#allocation7], 0
    %12 = vsyncpa [#allocation5], 0
    %s13 = scalar_lea.sflag [#allocation5], 1
    %14 = vsyncpa %s13, 0
    loop: start=0, step=1, limit=10
    $region2: #{tpu_custom_call.1} parent=1 // loop_pre_header
      _
    $region3: #{tpu_custom_call.1} parent=1 // loop_header
      %s16 = sphi 0, %s20
      %p17 = scmp.ge.s32.totalorder %s16, 10
      %s23 = sphi 0, %s42
      %s24 = sphi 0, %s38
      %s25 = sphi 0, %s34
      %s26 = sphi 0, %s23
      %s27 = sphi 0, %s24
      %s28 = sphi 0, %s25
      %s29 = sphi 0, %s26
      %s30 = sphi 0, %s27
      %s31 = sphi 0, %s28
      %s47 = sphi 0, %s49
      %s50 = sphi 0, %s47
      %s51 = sphi 0, %s50
      %s67 = sphi 0, %s51
      %s75 = sphi 0, %s77
      %s78 = sphi 0, %s75
      %s79 = sphi 0, %s78
      %s95 = sphi 0, %s79
      %s101 = sphi 0, %s103
      %s104 = sphi 0, %s101
      %s105 = sphi 0, %s104
      %s121 = sphi 0, %s105
      %s129 = sphi 0, %s131
      %s132 = sphi 0, %s129
      %s133 = sphi 0, %s132
      %s149 = sphi 0, %s133
    $region4: #{tpu_custom_call.1} parent=1 // loop_header_branch
      %19 = sbr.rel (%p17) target = $region8
    $region5: #{tpu_custom_call.1} parent=1 // loop_body
      %s21 = ssub.s32 %s16, 1
      %s22 = ssub.s32 %s16, 2
      %s32 = sadd.s32 1, %s25
      %p33 = scmp.ge.s32.totalorder %s32, 1
      %s34 = scalar_select %p33, 0, %s32
      %s35 = sadd.s32 1, %s24
      %s36 = scalar_select %p33, %s35, %s24
      %p37 = scmp.ge.s32.totalorder %s36, 1
      %s38 = scalar_select %p37, 0, %s36
      %s39 = sadd.s32 1, %s23
      %s40 = scalar_select %p37, %s39, %s23
      %p41 = scmp.ge.s32.totalorder %s40, 8
      %s42 = scalar_select %p41, 0, %s40
      %s43 = ssub.s32 %s23, %s42
      %s44 = ssub.s32 %s25, %s34
      %s45 = sor.u32 %s43, %s44
      %p46 = scmp.eq.s32.totalorder %s45, 0
      %s48 = sadd.s32 %s47, 1
      %s49 = scalar_select %p46, %s47, %s48
      %p52 = pneg %p46
      %p53 = scmp.eq.s32.totalorder %s16, 7
      %p54 = por %p52, %p53
      %p55 = scmp.ne.s32.totalorder %s47, %s50
      %p56 = scmp.eq.s32.totalorder %s16, 0
      %p57 = por %p55, %p56
      %p58 = scmp.ne.s32.totalorder %s47, %s50
      %p59 = scmp.eq.s32.totalorder %s21, 7
      %p60 = por %p58, %p59
      %p61 = scmp.ne.s32.totalorder %s50, %s51
      %p62 = scmp.eq.s32.totalorder %s21, 0
      %p63 = por %p61, %p62
      %p64 = scmp.ne.s32.totalorder %s50, %s51
      %p65 = scmp.eq.s32.totalorder %s22, 7
      %p66 = por %p64, %p65
      %p68 = scmp.ne.s32.totalorder %s51, %s67
      %p69 = scmp.eq.s32.totalorder %s22, 0
      %p70 = por %p68, %p69
      %s71 = ssub.s32 %s25, %s34
      %s72 = ssub.s32 %s24, %s38
      %s73 = sor.u32 %s71, %s72
      %p74 = scmp.eq.s32.totalorder %s73, 0
      %s76 = sadd.s32 %s75, 1
      %s77 = scalar_select %p74, %s75, %s76
      %p80 = pneg %p74
      %p81 = scmp.eq.s32.totalorder %s16, 7
      %p82 = por %p80, %p81
      %p83 = scmp.ne.s32.totalorder %s75, %s78
      %p84 = scmp.eq.s32.totalorder %s16, 0
      %p85 = por %p83, %p84
      %p86 = scmp.ne.s32.totalorder %s75, %s78
      %p87 = scmp.eq.s32.totalorder %s21, 7
      %p88 = por %p86, %p87
      %p89 = scmp.ne.s32.totalorder %s78, %s79
      %p90 = scmp.eq.s32.totalorder %s21, 0
      %p91 = por %p89, %p90
      %p92 = scmp.ne.s32.totalorder %s78, %s79
      %p93 = scmp.eq.s32.totalorder %s22, 7
      %p94 = por %p92, %p93
      %p96 = scmp.ne.s32.totalorder %s79, %s95
      %p97 = scmp.eq.s32.totalorder %s22, 0
      %p98 = por %p96, %p97
      %s99 = ssub.s32 %s24, %s38
      %p100 = scmp.eq.s32.totalorder %s99, 0
      %s102 = sadd.s32 %s101, 1
      %s103 = scalar_select %p100, %s101, %s102
      %p106 = pneg %p100
      %p107 = scmp.eq.s32.totalorder %s16, 7
      %p108 = por %p106, %p107
      %p109 = scmp.ne.s32.totalorder %s101, %s104
      %p110 = scmp.eq.s32.totalorder %s16, 0
      %p111 = por %p109, %p110
      %p112 = scmp.ne.s32.totalorder %s101, %s104
      %p113 = scmp.eq.s32.totalorder %s21, 7
      %p114 = por %p112, %p113
      %p115 = scmp.ne.s32.totalorder %s104, %s105
      %p116 = scmp.eq.s32.totalorder %s21, 0
      %p117 = por %p115, %p116
      %p118 = scmp.ne.s32.totalorder %s104, %s105
      %p119 = scmp.eq.s32.totalorder %s22, 7
      %p120 = por %p118, %p119
      %p122 = scmp.ne.s32.totalorder %s105, %s121
      %p123 = scmp.eq.s32.totalorder %s22, 0
      %p124 = por %p122, %p123
      %s125 = ssub.s32 %s23, %s42
      %s126 = ssub.s32 %s24, %s38
      %s127 = sor.u32 %s125, %s126
      %p128 = scmp.eq.s32.totalorder %s127, 0
      %s130 = sadd.s32 %s129, 1
      %s131 = scalar_select %p128, %s129, %s130
      %p134 = pneg %p128
      %p135 = scmp.eq.s32.totalorder %s16, 7
      %p136 = por %p134, %p135
      %p137 = scmp.ne.s32.totalorder %s129, %s132
      %p138 = scmp.eq.s32.totalorder %s16, 0
      %p139 = por %p137, %p138
      %p140 = scmp.ne.s32.totalorder %s129, %s132
      %p141 = scmp.eq.s32.totalorder %s21, 7
      %p142 = por %p140, %p141
      %p143 = scmp.ne.s32.totalorder %s132, %s133
      %p144 = scmp.eq.s32.totalorder %s21, 0
      %p145 = por %p143, %p144
      %p146 = scmp.ne.s32.totalorder %s132, %s133
      %p147 = scmp.eq.s32.totalorder %s22, 7
      %p148 = por %p146, %p147
      %p150 = scmp.ne.s32.totalorder %s133, %s149
      %p151 = scmp.eq.s32.totalorder %s22, 0
      %p152 = por %p150, %p151
      %p153 = scmp.le.s32.totalorder 1, %s16
      %p154 = scmp.lt.s32.totalorder %s16, 9
      %p155 = pnand %p153, %p154
      %p156 = pneg %p155
      // Predicated region
      $region9: #{tpu_custom_call.1} parent=5 // pred_check
        _
      $region10: #{tpu_custom_call.1} parent=5 // pred_check_branch
        %158 = sbr.rel (%p155) target = $region12
      $region11: #{tpu_custom_call.1} parent=5 // pred_region
        %s159 = ssub.s32 %s16, 1
        // Predicated region
        $region13: #{tpu_custom_call.1} parent=11 // pred_check
          %p160 = pneg %p91
        $region14: #{tpu_custom_call.1} parent=11 // pred_check_branch
          %162 = sbr.rel (%p160) target = $region16
        $region15: #{tpu_custom_call.1} parent=11 // pred_region
          %s163 = smul.u32 16, %s28
          %s165 = ssub.s32 1024, 1024
          %166 = vsyncadd [#allocation7], %s165
          %s167 = sadd.s32 %s27, %s163
          %s168 = smul.addr %s167, 64
          %s169 = scalar_lea.hbm %s1, %s168
          %s170 = sshll.u32 [#allocation6], 4
          %s171 = int_to_ptr.vmem [resolvable:$true] %s170
          %176 = dma.hbm_to_vmem [thread:$0]  %s169, 1024, %s171, [#allocation7], 64, 64, 4
        $region16: #{tpu_custom_call.1} parent=11 // pred_fallthru
          _
        // Predicated region
        $region17: #{tpu_custom_call.1} parent=11 // pred_check
          %p177 = pneg %p117
        $region18: #{tpu_custom_call.1} parent=11 // pred_check_branch
          %179 = sbr.rel (%p177) target = $region20
        $region19: #{tpu_custom_call.1} parent=11 // pred_region
          %p180 = scmp.lt.s32.totalorder %s27, 0
          %s181 = scalar_select %p180, %s27, 0
          %s182 = scalar_lea.vmem %s2, %s181
        $region20: #{tpu_custom_call.1} parent=11 // pred_fallthru
          _
      $region12: #{tpu_custom_call.1} parent=5 // pred_fallthru
        _
      %p183 = scmp.lt.s32.totalorder %s16, 8
      // Predicated region
      $region21: #{tpu_custom_call.1} parent=5 // pred_check
        %p184 = pneg %p183
      $region22: #{tpu_custom_call.1} parent=5 // pred_check_branch
        %186 = sbr.rel (%p184) target = $region24
      $region23: #{tpu_custom_call.1} parent=5 // pred_region
        // Predicated region
        $region25: #{tpu_custom_call.1} parent=23 // pred_check
          %p187 = pneg %p57
        $region26: #{tpu_custom_call.1} parent=23 // pred_check_branch
          %189 = sbr.rel (%p187) target = $region28
        $region27: #{tpu_custom_call.1} parent=23 // pred_region
          %s190 = sand.u32 %s47, 1
          %s191 = scalar_lea.sflag [#allocation4], %s190
          %s192 = sand.u32 %s47, 1
          %s193 = smul.addr %s192, 128
          %s194 = scalar_lea.vmem [#allocation3], %s193
          %s195 = smul.u32 32, %s23
          %s197 = ssub.s32 2048, 2048
          %198 = vsyncadd %s191, %s197
          %s199 = sadd.s32 %s25, %s195
          %s200 = smul.addr %s199, 64
          %s201 = scalar_lea.hbm %s0, %s200
          %s202 = sshll.u32 %s194, 4
          %s203 = int_to_ptr.vmem [resolvable:$true] %s202
          %208 = dma.hbm_to_vmem [thread:$0]  %s201, 2048, %s203, %s191, 64, 64, 4
        $region28: #{tpu_custom_call.1} parent=23 // pred_fallthru
          _
      $region24: #{tpu_custom_call.1} parent=5 // pred_fallthru
        _
      %p209 = scmp.le.s32.totalorder 1, %s16
      %p210 = scmp.lt.s32.totalorder %s16, 9
      %p211 = pnand %p209, %p210
      %p212 = pneg %p211
      // Predicated region
      $region29: #{tpu_custom_call.1} parent=5 // pred_check
        _
      $region30: #{tpu_custom_call.1} parent=5 // pred_check_branch
        %214 = sbr.rel (%p211) target = $region32
      $region31: #{tpu_custom_call.1} parent=5 // pred_region
        %s215 = ssub.s32 %s16, 1
        %s216 = sand.u32 %s50, 1
        %s217 = scalar_lea.sflag [#allocation4], %s216
        %s218 = sand.u32 %s50, 1
        %s219 = smul.addr %s218, 128
        %s220 = scalar_lea.vmem [#allocation3], %s219
        // Predicated region
        $region33: #{tpu_custom_call.1} parent=31 // pred_check
          %p221 = pneg %p63
        $region34: #{tpu_custom_call.1} parent=31 // pred_check_branch
          %223 = sbr.rel (%p221) target = $region36
        $region35: #{tpu_custom_call.1} parent=31 // pred_region
          %224 = dma.done %s217, 2048
        $region36: #{tpu_custom_call.1} parent=31 // pred_fallthru
          _
        // Predicated region
        $region37: #{tpu_custom_call.1} parent=31 // pred_check
          %p225 = pneg %p91
        $region38: #{tpu_custom_call.1} parent=31 // pred_check_branch
          %227 = sbr.rel (%p225) target = $region40
        $region39: #{tpu_custom_call.1} parent=31 // pred_region
          %228 = dma.done [#allocation7], 1024
        $region40: #{tpu_custom_call.1} parent=31 // pred_fallthru
          _
        %s229 = sand.u32 %s50, 1
        %s230 = scalar_lea.sflag [#allocation4], %s229
        %s231 = sand.u32 %s50, 1
        %s232 = smul.addr %s231, 128
        %s233 = scalar_lea.vmem [#allocation3], %s232
        %p234 = pneg %p63
        %p235 = pneg %p60
        %p236 = pneg %p91
        %p237 = pneg %p88
        %p238 = scmp.lt.s32.totalorder %s27, 0
        %s239 = scalar_select %p238, %s27, 0
        %s240 = scalar_lea.vmem %s2, %s239
        %p241 = pneg %p117
        %p242 = pneg %p114
        %p243 = pneg %p145
        %p244 = pneg %p142
        %s245 = sand.u32 %s132, 1
        %s246 = scalar_lea.sflag [#allocation5], %s245
        %s247 = sand.u32 %s132, 1
        %s248 = smul.addr %s247, 256
        %s249 = scalar_lea.vmem [#allocation8], %s248
        %s250 = smul.u32 32, %s26
        %s251 = smul.u32 16, %s28
        %p252 = scmp.lt.s32.totalorder %s27, 0
        %s253 = scalar_select %p252, %s27, 0
        %s254 = scalar_lea.vmem %s2, %s253
        %s255 = smul.u32 32, %s26
        %p257 = scmp.eq.s32.totalorder %s28, 0
        // Predicated region
        $region41: #{tpu_custom_call.1} parent=31 // pred_check
          %p258 = pneg %p257
        $region42: #{tpu_custom_call.1} parent=31 // pred_check_branch
          %260 = sbr.rel (%p258) target = $region44
        $region43: #{tpu_custom_call.1} parent=31 // pred_region
          %261 = vst [vmem:[#allocation2] sm:$0xff] 0.0
          %262 = vst [vmem:[#allocation2 + $0x8] sm:$0xff] 0.0
          %263 = vst [vmem:[#allocation2 + $0x10] sm:$0xff] 0.0
          %264 = vst [vmem:[#allocation2 + $0x18] sm:$0xff] 0.0
          %265 = vst [vmem:[#allocation2 + $0x20] sm:$0xff] 0.0
          %266 = vst [vmem:[#allocation2 + $0x28] sm:$0xff] 0.0
          %267 = vst [vmem:[#allocation2 + $0x30] sm:$0xff] 0.0
          %268 = vst [vmem:[#allocation2 + $0x38] sm:$0xff] 0.0
          %269 = vst [vmem:[#allocation2 + $0x40] sm:$0xff] 0.0
          %270 = vst [vmem:[#allocation2 + $0x48] sm:$0xff] 0.0
          %271 = vst [vmem:[#allocation2 + $0x50] sm:$0xff] 0.0
          %272 = vst [vmem:[#allocation2 + $0x58] sm:$0xff] 0.0
          %273 = vst [vmem:[#allocation2 + $0x60] sm:$0xff] 0.0
          %274 = vst [vmem:[#allocation2 + $0x68] sm:$0xff] 0.0
          %275 = vst [vmem:[#allocation2 + $0x70] sm:$0xff] 0.0
          %276 = vst [vmem:[#allocation2 + $0x78] sm:$0xff] 0.0
          %277 = vst [vmem:[#allocation2 + $0x80] sm:$0xff] 0.0
          %278 = vst [vmem:[#allocation2 + $0x88] sm:$0xff] 0.0
          %279 = vst [vmem:[#allocation2 + $0x90] sm:$0xff] 0.0
          %280 = vst [vmem:[#allocation2 + $0x98] sm:$0xff] 0.0
          %281 = vst [vmem:[#allocation2 + $0xa0] sm:$0xff] 0.0
          %282 = vst [vmem:[#allocation2 + $0xa8] sm:$0xff] 0.0
          %283 = vst [vmem:[#allocation2 + $0xb0] sm:$0xff] 0.0
          %284 = vst [vmem:[#allocation2 + $0xb8] sm:$0xff] 0.0
          %285 = vst [vmem:[#allocation2 + $0xc0] sm:$0xff] 0.0
          %286 = vst [vmem:[#allocation2 + $0xc8] sm:$0xff] 0.0
          %287 = vst [vmem:[#allocation2 + $0xd0] sm:$0xff] 0.0
          %288 = vst [vmem:[#allocation2 + $0xd8] sm:$0xff] 0.0
          %289 = vst [vmem:[#allocation2 + $0xe0] sm:$0xff] 0.0
          %290 = vst [vmem:[#allocation2 + $0xe8] sm:$0xff] 0.0
          %291 = vst [vmem:[#allocation2 + $0xf0] sm:$0xff] 0.0
          %292 = vst [vmem:[#allocation2 + $0xf8] sm:$0xff] 0.0
        $region44: #{tpu_custom_call.1} parent=31 // pred_fallthru
          _
        %v293 = vld [vmem:[#allocation2] sm:$0xff]
        %v294 = vld [vmem:[#allocation2 + $0x8] sm:$0xff]
        %v295 = vld [vmem:[#allocation2 + $0x10] sm:$0xff]
        %v296 = vld [vmem:[#allocation2 + $0x18] sm:$0xff]
        %v297 = vld [vmem:[#allocation2 + $0x20] sm:$0xff]
        %v298 = vld [vmem:[#allocation2 + $0x28] sm:$0xff]
        %v299 = vld [vmem:[#allocation2 + $0x30] sm:$0xff]
        %v300 = vld [vmem:[#allocation2 + $0x38] sm:$0xff]
        %v301 = vld [vmem:[#allocation2 + $0x40] sm:$0xff]
        %v302 = vld [vmem:[#allocation2 + $0x48] sm:$0xff]
        %v303 = vld [vmem:[#allocation2 + $0x50] sm:$0xff]
        %v304 = vld [vmem:[#allocation2 + $0x58] sm:$0xff]
        %v305 = vld [vmem:[#allocation2 + $0x60] sm:$0xff]
        %v306 = vld [vmem:[#allocation2 + $0x68] sm:$0xff]
        %v307 = vld [vmem:[#allocation2 + $0x70] sm:$0xff]
        %v308 = vld [vmem:[#allocation2 + $0x78] sm:$0xff]
        %v309 = vld [vmem:[#allocation2 + $0x80] sm:$0xff]
        %v310 = vld [vmem:[#allocation2 + $0x88] sm:$0xff]
        %v311 = vld [vmem:[#allocation2 + $0x90] sm:$0xff]
        %v312 = vld [vmem:[#allocation2 + $0x98] sm:$0xff]
        %v313 = vld [vmem:[#allocation2 + $0xa0] sm:$0xff]
        %v314 = vld [vmem:[#allocation2 + $0xa8] sm:$0xff]
        %v315 = vld [vmem:[#allocation2 + $0xb0] sm:$0xff]
        %v316 = vld [vmem:[#allocation2 + $0xb8] sm:$0xff]
        %v317 = vld [vmem:[#allocation2 + $0xc0] sm:$0xff]
        %v318 = vld [vmem:[#allocation2 + $0xc8] sm:$0xff]
        %v319 = vld [vmem:[#allocation2 + $0xd0] sm:$0xff]
        %v320 = vld [vmem:[#allocation2 + $0xd8] sm:$0xff]
        %v321 = vld [vmem:[#allocation2 + $0xe0] sm:$0xff]
        %v322 = vld [vmem:[#allocation2 + $0xe8] sm:$0xff]
        %v323 = vld [vmem:[#allocation2 + $0xf0] sm:$0xff]
        %v324 = vld [vmem:[#allocation2 + $0xf8] sm:$0xff]
        %v325 = vld [vmem:[%s220] sm:$0xf]
        %v326 = vld [vmem:[%s220 + $0x4] sm:$0xf]
        %v327 = vld [vmem:[%s220 + $0x8] sm:$0xf]
        %v328 = vld [vmem:[%s220 + $0xc] sm:$0xf]
        %v329 = vld [vmem:[%s220 + $0x10] sm:$0xf]
        %v330 = vld [vmem:[%s220 + $0x14] sm:$0xf]
        %v331 = vld [vmem:[%s220 + $0x18] sm:$0xf]
        %v332 = vld [vmem:[%s220 + $0x1c] sm:$0xf]
        %v333 = vld [vmem:[%s220 + $0x20] sm:$0xf]
        %v334 = vld [vmem:[%s220 + $0x24] sm:$0xf]
        %v335 = vld [vmem:[%s220 + $0x28] sm:$0xf]
        %v336 = vld [vmem:[%s220 + $0x2c] sm:$0xf]
        %v337 = vld [vmem:[%s220 + $0x30] sm:$0xf]
        %v338 = vld [vmem:[%s220 + $0x34] sm:$0xf]
        %v339 = vld [vmem:[%s220 + $0x38] sm:$0xf]
        %v340 = vld [vmem:[%s220 + $0x3c] sm:$0xf]
        %v341 = vld [vmem:[%s220 + $0x40] sm:$0xf]
        %v342 = vld [vmem:[%s220 + $0x44] sm:$0xf]
        %v343 = vld [vmem:[%s220 + $0x48] sm:$0xf]
        %v344 = vld [vmem:[%s220 + $0x4c] sm:$0xf]
        %v345 = vld [vmem:[%s220 + $0x50] sm:$0xf]
        %v346 = vld [vmem:[%s220 + $0x54] sm:$0xf]
        %v347 = vld [vmem:[%s220 + $0x58] sm:$0xf]
        %v348 = vld [vmem:[%s220 + $0x5c] sm:$0xf]
        %v349 = vld [vmem:[%s220 + $0x60] sm:$0xf]
        %v350 = vld [vmem:[%s220 + $0x64] sm:$0xf]
        %v351 = vld [vmem:[%s220 + $0x68] sm:$0xf]
        %v352 = vld [vmem:[%s220 + $0x6c] sm:$0xf]
        %v353 = vld [vmem:[%s220 + $0x70] sm:$0xf]
        %v354 = vld [vmem:[%s220 + $0x74] sm:$0xf]
        %v355 = vld [vmem:[%s220 + $0x78] sm:$0xf]
        %v356 = vld [vmem:[%s220 + $0x7c] sm:$0xf]
        %v357 = vld [vmem:[#allocation6] sm:$0xf]
        %v358 = vld [vmem:[#allocation6 + $0x4] sm:$0xf]
        %v359 = vld [vmem:[#allocation6 + $0x8] sm:$0xf]
        %v360 = vld [vmem:[#allocation6 + $0xc] sm:$0xf]
        %v361 = vld [vmem:[#allocation6 + $0x10] sm:$0xf]
        %v362 = vld [vmem:[#allocation6 + $0x14] sm:$0xf]
        %v363 = vld [vmem:[#allocation6 + $0x18] sm:$0xf]
        %v364 = vld [vmem:[#allocation6 + $0x1c] sm:$0xf]
        %v365 = vld [vmem:[#allocation6 + $0x20] sm:$0xf]
        %v366 = vld [vmem:[#allocation6 + $0x24] sm:$0xf]
        %v367 = vld [vmem:[#allocation6 + $0x28] sm:$0xf]
        %v368 = vld [vmem:[#allocation6 + $0x2c] sm:$0xf]
        %v369 = vld [vmem:[#allocation6 + $0x30] sm:$0xf]
        %v370 = vld [vmem:[#allocation6 + $0x34] sm:$0xf]
        %v371 = vld [vmem:[#allocation6 + $0x38] sm:$0xf]
        %v372 = vld [vmem:[#allocation6 + $0x3c] sm:$0xf]
        %v405 = vunpack.c.l.b16 %v325
        %v406 = vunpack.c.l.b16 %v326
        %v407 = vunpack.c.l.b16 %v327
        %v408 = vunpack.c.l.b16 %v328
        %v409 = vunpack.c.l.b16 %v329
        %v410 = vunpack.c.l.b16 %v330
        %v411 = vunpack.c.l.b16 %v331
        %v412 = vunpack.c.l.b16 %v332
        %v413 = vunpack.c.l.b16 %v333
        %v414 = vunpack.c.l.b16 %v334
        %v415 = vunpack.c.l.b16 %v335
        %v416 = vunpack.c.l.b16 %v336
        %v417 = vunpack.c.l.b16 %v337
        %v418 = vunpack.c.l.b16 %v338
        %v419 = vunpack.c.l.b16 %v339
        %v420 = vunpack.c.l.b16 %v340
        %v421 = vunpack.c.l.b16 %v341
        %v422 = vunpack.c.l.b16 %v342
        %v423 = vunpack.c.l.b16 %v343
        %v424 = vunpack.c.l.b16 %v344
        %v425 = vunpack.c.l.b16 %v345
        %v426 = vunpack.c.l.b16 %v346
        %v427 = vunpack.c.l.b16 %v347
        %v428 = vunpack.c.l.b16 %v348
        %v429 = vunpack.c.l.b16 %v349
        %v430 = vunpack.c.l.b16 %v350
        %v431 = vunpack.c.l.b16 %v351
        %v432 = vunpack.c.l.b16 %v352
        %v433 = vunpack.c.l.b16 %v353
        %v434 = vunpack.c.l.b16 %v354
        %v435 = vunpack.c.l.b16 %v355
        %v436 = vunpack.c.l.b16 %v356
        %v437 = vpack.c.b16 %v406, %v405
        %v438 = vpack.c.b16 %v408, %v407
        %v439 = vpack.c.b16 %v410, %v409
        %v440 = vpack.c.b16 %v412, %v411
        %v441 = vpack.c.b16 %v414, %v413
        %v442 = vpack.c.b16 %v416, %v415
        %v443 = vpack.c.b16 %v418, %v417
        %v444 = vpack.c.b16 %v420, %v419
        %v445 = vpack.c.b16 %v422, %v421
        %v446 = vpack.c.b16 %v424, %v423
        %v447 = vpack.c.b16 %v426, %v425
        %v448 = vpack.c.b16 %v428, %v427
        %v449 = vpack.c.b16 %v430, %v429
        %v450 = vpack.c.b16 %v432, %v431
        %v451 = vpack.c.b16 %v434, %v433
        %v452 = vpack.c.b16 %v436, %v435
        %v485 = vunpack.c.l.b16 %v357
        %v486 = vunpack.c.l.b16 %v358
        %v487 = vunpack.c.l.b16 %v359
        %v488 = vunpack.c.l.b16 %v360
        %v489 = vunpack.c.l.b16 %v361
        %v490 = vunpack.c.l.b16 %v362
        %v491 = vunpack.c.l.b16 %v363
        %v492 = vunpack.c.l.b16 %v364
        %v493 = vunpack.c.l.b16 %v365
        %v494 = vunpack.c.l.b16 %v366
        %v495 = vunpack.c.l.b16 %v367
        %v496 = vunpack.c.l.b16 %v368
        %v497 = vunpack.c.l.b16 %v369
        %v498 = vunpack.c.l.b16 %v370
        %v499 = vunpack.c.l.b16 %v371
        %v500 = vunpack.c.l.b16 %v372
        %v501 = vpack.c.b16 %v486, %v485
        %v502 = vpack.c.b16 %v488, %v487
        %v503 = vpack.c.b16 %v490, %v489
        %v504 = vpack.c.b16 %v492, %v491
        %v505 = vpack.c.b16 %v494, %v493
        %v506 = vpack.c.b16 %v496, %v495
        %v507 = vpack.c.b16 %v498, %v497
        %v508 = vpack.c.b16 %v500, %v499
        %517 = vmatprep.subr.bf16.mxu0 0
        %518 = vmatpush1.bf16.msra.mxu0 %v501
        %519 = vmatprep.subr.bf16.mxu0 0
        %520 = vmatpush1.bf16.msra.mxu0 %v502
        %521 = vmatprep.subr.bf16.mxu0 0
        %522 = vmatpush1.bf16.msra.mxu0 %v503
        %523 = vmatprep.subr.bf16.mxu0 0
        %524 = vmatpush1.bf16.msra.mxu0 %v504
        %525 = vmatprep.subr.bf16.mxu0 0
        %526 = vmatpush1.bf16.msra.mxu0 %v505
        %527 = vmatprep.subr.bf16.mxu0 0
        %528 = vmatpush1.bf16.msra.mxu0 %v506
        %529 = vmatprep.subr.bf16.mxu0 0
        %530 = vmatpush1.bf16.msra.mxu0 %v507
        %531 = vmatprep.subr.bf16.mxu0 0
        %532 = vmatpush1.bf16.msra.mxu0 %v508
        %533 = vmatprep.subr.bf16.mxu0 0
        %534 = vmatpush1.bf16.msra.mxu0 0
        %535 = vmatprep.subr.bf16.mxu0 0
        %536 = vmatpush1.bf16.msra.mxu0 0
        %537 = vmatprep.subr.bf16.mxu0 0
        %538 = vmatpush1.bf16.msra.mxu0 0
        %539 = vmatprep.subr.bf16.mxu0 0
        %540 = vmatpush1.bf16.msra.mxu0 0
        %541 = vmatprep.subr.bf16.mxu0 0
        %542 = vmatpush1.bf16.msra.mxu0 0
        %543 = vmatprep.subr.bf16.mxu0 0
        %544 = vmatpush1.bf16.msra.mxu0 0
        %545 = vmatprep.subr.bf16.mxu0 0
        %546 = vmatpush1.bf16.msra.mxu0 0
        %547 = vmatprep.subr.bf16.mxu0 0
        %548 = vmatpush1.bf16.msra.mxu0 0
        %549 = vmatprep.mubr.bf16.mxu0 0
        %550 = vmatmul.mubr.bf16.gmra.mrb[0].mxu0 %v437
        %v551 = vpop.f32.mrb[0].mxu0
        %v552 = vadd.f32 0.0, %v551
        %v553 = vpop.f32.mrb[0].mxu0
        %v554 = vpop.f32.mrb[0].mxu0
        %v555 = vadd.f32 0.0, %v554
        %v556 = vpop.f32.mrb[0].mxu0
        %557 = vmatprep.mubr.bf16.mxu0 0
        %558 = vmatmul.mubr.bf16.gmra.mrb[0].mxu0 %v438
        %v559 = vpop.f32.mrb[0].mxu0
        %v560 = vadd.f32 0.0, %v559
        %v561 = vpop.f32.mrb[0].mxu0
        %v562 = vpop.f32.mrb[0].mxu0
        %v563 = vadd.f32 0.0, %v562
        %v564 = vpop.f32.mrb[0].mxu0
        %565 = vmatprep.mubr.bf16.mxu0 0
        %566 = vmatmul.mubr.bf16.gmra.mrb[0].mxu0 %v439
        %v567 = vpop.f32.mrb[0].mxu0
        %v568 = vadd.f32 0.0, %v567
        %v569 = vpop.f32.mrb[0].mxu0
        %v570 = vpop.f32.mrb[0].mxu0
        %v571 = vadd.f32 0.0, %v570
        %v572 = vpop.f32.mrb[0].mxu0
        %573 = vmatprep.mubr.bf16.mxu0 0
        %574 = vmatmul.mubr.bf16.gmra.mrb[0].mxu0 %v440
        %v575 = vpop.f32.mrb[0].mxu0
        %v576 = vadd.f32 0.0, %v575
        %v577 = vpop.f32.mrb[0].mxu0
        %v578 = vpop.f32.mrb[0].mxu0
        %v579 = vadd.f32 0.0, %v578
        %v580 = vpop.f32.mrb[0].mxu0
        %581 = vmatprep.mubr.bf16.mxu0 0
        %582 = vmatmul.mubr.bf16.gmra.mrb[0].mxu0 %v441
        %v583 = vpop.f32.mrb[0].mxu0
        %v584 = vadd.f32 0.0, %v583
        %v585 = vpop.f32.mrb[0].mxu0
        %v586 = vpop.f32.mrb[0].mxu0
        %v587 = vadd.f32 0.0, %v586
        %v588 = vpop.f32.mrb[0].mxu0
        %589 = vmatprep.mubr.bf16.mxu0 0
        %590 = vmatmul.mubr.bf16.gmra.mrb[0].mxu0 %v442
        %v591 = vpop.f32.mrb[0].mxu0
        %v592 = vadd.f32 0.0, %v591
        %v593 = vpop.f32.mrb[0].mxu0
        %v594 = vpop.f32.mrb[0].mxu0
        %v595 = vadd.f32 0.0, %v594
        %v596 = vpop.f32.mrb[0].mxu0
        %597 = vmatprep.mubr.bf16.mxu0 0
        %598 = vmatmul.mubr.bf16.gmra.mrb[0].mxu0 %v443
        %v599 = vpop.f32.mrb[0].mxu0
        %v600 = vadd.f32 0.0, %v599
        %v601 = vpop.f32.mrb[0].mxu0
        %v602 = vpop.f32.mrb[0].mxu0
        %v603 = vadd.f32 0.0, %v602
        %v604 = vpop.f32.mrb[0].mxu0
        %605 = vmatprep.mubr.bf16.mxu0 0
        %606 = vmatmul.mubr.bf16.gmra.mrb[0].mxu0 %v444
        %v607 = vpop.f32.mrb[0].mxu0
        %v608 = vadd.f32 0.0, %v607
        %v609 = vpop.f32.mrb[0].mxu0
        %v610 = vpop.f32.mrb[0].mxu0
        %v611 = vadd.f32 0.0, %v610
        %v612 = vpop.f32.mrb[0].mxu0
        %613 = vmatprep.mubr.bf16.mxu0 0
        %614 = vmatmul.mubr.bf16.gmra.mrb[0].mxu0 %v445
        %v615 = vpop.f32.mrb[0].mxu0
        %v616 = vadd.f32 0.0, %v615
        %v617 = vpop.f32.mrb[0].mxu0
        %v618 = vpop.f32.mrb[0].mxu0
        %v619 = vadd.f32 0.0, %v618
        %v620 = vpop.f32.mrb[0].mxu0
        %621 = vmatprep.mubr.bf16.mxu0 0
        %622 = vmatmul.mubr.bf16.gmra.mrb[0].mxu0 %v446
        %v623 = vpop.f32.mrb[0].mxu0
        %v624 = vadd.f32 0.0, %v623
        %v625 = vpop.f32.mrb[0].mxu0
        %v626 = vpop.f32.mrb[0].mxu0
        %v627 = vadd.f32 0.0, %v626
        %v628 = vpop.f32.mrb[0].mxu0
        %629 = vmatprep.mubr.bf16.mxu0 0
        %630 = vmatmul.mubr.bf16.gmra.mrb[0].mxu0 %v447
        %v631 = vpop.f32.mrb[0].mxu0
        %v632 = vadd.f32 0.0, %v631
        %v633 = vpop.f32.mrb[0].mxu0
        %v634 = vpop.f32.mrb[0].mxu0
        %v635 = vadd.f32 0.0, %v634
        %v636 = vpop.f32.mrb[0].mxu0
        %637 = vmatprep.mubr.bf16.mxu0 0
        %638 = vmatmul.mubr.bf16.gmra.mrb[0].mxu0 %v448
        %v639 = vpop.f32.mrb[0].mxu0
        %v640 = vadd.f32 0.0, %v639
        %v641 = vpop.f32.mrb[0].mxu0
        %v642 = vpop.f32.mrb[0].mxu0
        %v643 = vadd.f32 0.0, %v642
        %v644 = vpop.f32.mrb[0].mxu0
        %645 = vmatprep.mubr.bf16.mxu0 0
        %646 = vmatmul.mubr.bf16.gmra.mrb[0].mxu0 %v449
        %v647 = vpop.f32.mrb[0].mxu0
        %v648 = vadd.f32 0.0, %v647
        %v649 = vpop.f32.mrb[0].mxu0
        %v650 = vpop.f32.mrb[0].mxu0
        %v651 = vadd.f32 0.0, %v650
        %v652 = vpop.f32.mrb[0].mxu0
        %653 = vmatprep.mubr.bf16.mxu0 0
        %654 = vmatmul.mubr.bf16.gmra.mrb[0].mxu0 %v450
        %v655 = vpop.f32.mrb[0].mxu0
        %v656 = vadd.f32 0.0, %v655
        %v657 = vpop.f32.mrb[0].mxu0
        %v658 = vpop.f32.mrb[0].mxu0
        %v659 = vadd.f32 0.0, %v658
        %v660 = vpop.f32.mrb[0].mxu0
        %661 = vmatprep.mubr.bf16.mxu0 0
        %662 = vmatmul.mubr.bf16.gmra.mrb[0].mxu0 %v451
        %v663 = vpop.f32.mrb[0].mxu0
        %v664 = vadd.f32 0.0, %v663
        %v665 = vpop.f32.mrb[0].mxu0
        %v666 = vpop.f32.mrb[0].mxu0
        %v667 = vadd.f32 0.0, %v666
        %v668 = vpop.f32.mrb[0].mxu0
        %669 = vmatprep.mubr.bf16.mxu0 0
        %670 = vmatmul.mubr.bf16.gmra.mrb[0].mxu0 %v452
        %v671 = vpop.f32.mrb[0].mxu0
        %v672 = vadd.f32 0.0, %v671
        %v673 = vpop.f32.mrb[0].mxu0
        %v674 = vpop.f32.mrb[0].mxu0
        %v675 = vadd.f32 0.0, %v674
        %v676 = vpop.f32.mrb[0].mxu0
        %677 = vdwg.mxu0
        %v678 = vadd.f32 %v293, %v552
        %v679 = vadd.f32 %v294, %v555
        %v680 = vadd.f32 %v295, %v560
        %v681 = vadd.f32 %v296, %v563
        %v682 = vadd.f32 %v297, %v568
        %v683 = vadd.f32 %v298, %v571
        %v684 = vadd.f32 %v299, %v576
        %v685 = vadd.f32 %v300, %v579
        %v686 = vadd.f32 %v301, %v584
        %v687 = vadd.f32 %v302, %v587
        %v688 = vadd.f32 %v303, %v592
        %v689 = vadd.f32 %v304, %v595
        %v690 = vadd.f32 %v305, %v600
        %v691 = vadd.f32 %v306, %v603
        %v692 = vadd.f32 %v307, %v608
        %v693 = vadd.f32 %v308, %v611
        %v694 = vadd.f32 %v309, %v616
        %v695 = vadd.f32 %v310, %v619
        %v696 = vadd.f32 %v311, %v624
        %v697 = vadd.f32 %v312, %v627
        %v698 = vadd.f32 %v313, %v632
        %v699 = vadd.f32 %v314, %v635
        %v700 = vadd.f32 %v315, %v640
        %v701 = vadd.f32 %v316, %v643
        %v702 = vadd.f32 %v317, %v648
        %v703 = vadd.f32 %v318, %v651
        %v704 = vadd.f32 %v319, %v656
        %v705 = vadd.f32 %v320, %v659
        %v706 = vadd.f32 %v321, %v664
        %v707 = vadd.f32 %v322, %v667
        %v708 = vadd.f32 %v323, %v672
        %v709 = vadd.f32 %v324, %v675
        %710 = vst [vmem:[#allocation2] sm:$0xff] %v678
        %711 = vst [vmem:[#allocation2 + $0x8] sm:$0xff] %v679
        %712 = vst [vmem:[#allocation2 + $0x10] sm:$0xff] %v680
        %713 = vst [vmem:[#allocation2 + $0x18] sm:$0xff] %v681
        %714 = vst [vmem:[#allocation2 + $0x20] sm:$0xff] %v682
        %715 = vst [vmem:[#allocation2 + $0x28] sm:$0xff] %v683
        %716 = vst [vmem:[#allocation2 + $0x30] sm:$0xff] %v684
        %717 = vst [vmem:[#allocation2 + $0x38] sm:$0xff] %v685
        %718 = vst [vmem:[#allocation2 + $0x40] sm:$0xff] %v686
        %719 = vst [vmem:[#allocation2 + $0x48] sm:$0xff] %v687
        %720 = vst [vmem:[#allocation2 + $0x50] sm:$0xff] %v688
        %721 = vst [vmem:[#allocation2 + $0x58] sm:$0xff] %v689
        %722 = vst [vmem:[#allocation2 + $0x60] sm:$0xff] %v690
        %723 = vst [vmem:[#allocation2 + $0x68] sm:$0xff] %v691
        %724 = vst [vmem:[#allocation2 + $0x70] sm:$0xff] %v692
        %725 = vst [vmem:[#allocation2 + $0x78] sm:$0xff] %v693
        %726 = vst [vmem:[#allocation2 + $0x80] sm:$0xff] %v694
        %727 = vst [vmem:[#allocation2 + $0x88] sm:$0xff] %v695
        %728 = vst [vmem:[#allocation2 + $0x90] sm:$0xff] %v696
        %729 = vst [vmem:[#allocation2 + $0x98] sm:$0xff] %v697
        %730 = vst [vmem:[#allocation2 + $0xa0] sm:$0xff] %v698
        %731 = vst [vmem:[#allocation2 + $0xa8] sm:$0xff] %v699
        %732 = vst [vmem:[#allocation2 + $0xb0] sm:$0xff] %v700
        %733 = vst [vmem:[#allocation2 + $0xb8] sm:$0xff] %v701
        %734 = vst [vmem:[#allocation2 + $0xc0] sm:$0xff] %v702
        %735 = vst [vmem:[#allocation2 + $0xc8] sm:$0xff] %v703
        %736 = vst [vmem:[#allocation2 + $0xd0] sm:$0xff] %v704
        %737 = vst [vmem:[#allocation2 + $0xd8] sm:$0xff] %v705
        %738 = vst [vmem:[#allocation2 + $0xe0] sm:$0xff] %v706
        %739 = vst [vmem:[#allocation2 + $0xe8] sm:$0xff] %v707
        %740 = vst [vmem:[#allocation2 + $0xf0] sm:$0xff] %v708
        %741 = vst [vmem:[#allocation2 + $0xf8] sm:$0xff] %v709
        // Predicated region
        $region45: #{tpu_custom_call.1} parent=31 // pred_check
          %p742 = pneg %p257
        $region46: #{tpu_custom_call.1} parent=31 // pred_check_branch
          %744 = sbr.rel (%p742) target = $region48
        $region47: #{tpu_custom_call.1} parent=31 // pred_region
          %v745 = vld [vmem:[#allocation2] sm:$0xff]
          %v746 = vld [vmem:[#allocation2 + $0x8] sm:$0xff]
          %v747 = vld [vmem:[#allocation2 + $0x10] sm:$0xff]
          %v748 = vld [vmem:[#allocation2 + $0x18] sm:$0xff]
          %v749 = vld [vmem:[#allocation2 + $0x20] sm:$0xff]
          %v750 = vld [vmem:[#allocation2 + $0x28] sm:$0xff]
          %v751 = vld [vmem:[#allocation2 + $0x30] sm:$0xff]
          %v752 = vld [vmem:[#allocation2 + $0x38] sm:$0xff]
          %v753 = vld [vmem:[#allocation2 + $0x40] sm:$0xff]
          %v754 = vld [vmem:[#allocation2 + $0x48] sm:$0xff]
          %v755 = vld [vmem:[#allocation2 + $0x50] sm:$0xff]
          %v756 = vld [vmem:[#allocation2 + $0x58] sm:$0xff]
          %v757 = vld [vmem:[#allocation2 + $0x60] sm:$0xff]
          %v758 = vld [vmem:[#allocation2 + $0x68] sm:$0xff]
          %v759 = vld [vmem:[#allocation2 + $0x70] sm:$0xff]
          %v760 = vld [vmem:[#allocation2 + $0x78] sm:$0xff]
          %v761 = vld [vmem:[#allocation2 + $0x80] sm:$0xff]
          %v762 = vld [vmem:[#allocation2 + $0x88] sm:$0xff]
          %v763 = vld [vmem:[#allocation2 + $0x90] sm:$0xff]
          %v764 = vld [vmem:[#allocation2 + $0x98] sm:$0xff]
          %v765 = vld [vmem:[#allocation2 + $0xa0] sm:$0xff]
          %v766 = vld [vmem:[#allocation2 + $0xa8] sm:$0xff]
          %v767 = vld [vmem:[#allocation2 + $0xb0] sm:$0xff]
          %v768 = vld [vmem:[#allocation2 + $0xb8] sm:$0xff]
          %v769 = vld [vmem:[#allocation2 + $0xc0] sm:$0xff]
          %v770 = vld [vmem:[#allocation2 + $0xc8] sm:$0xff]
          %v771 = vld [vmem:[#allocation2 + $0xd0] sm:$0xff]
          %v772 = vld [vmem:[#allocation2 + $0xd8] sm:$0xff]
          %v773 = vld [vmem:[#allocation2 + $0xe0] sm:$0xff]
          %v774 = vld [vmem:[#allocation2 + $0xe8] sm:$0xff]
          %v775 = vld [vmem:[#allocation2 + $0xf0] sm:$0xff]
          %v776 = vld [vmem:[#allocation2 + $0xf8] sm:$0xff]
          %v777 = vld [vmem:[%s254] sm:$0x1]
          %v779 = vlaneseq
          %v780 = vshrl.u32 %v779, 7
          %v781 = vsub.s32 0, %v780
          %v782 = vrot.slane %v777, %v781
          %v784 = vadd.f32 %v745, %v782
          %v785 = vadd.f32 %v746, %v782
          %v786 = vadd.f32 %v747, %v782
          %v787 = vadd.f32 %v748, %v782
          %v788 = vadd.f32 %v749, %v782
          %v789 = vadd.f32 %v750, %v782
          %v790 = vadd.f32 %v751, %v782
          %v791 = vadd.f32 %v752, %v782
          %v792 = vadd.f32 %v753, %v782
          %v793 = vadd.f32 %v754, %v782
          %v794 = vadd.f32 %v755, %v782
          %v795 = vadd.f32 %v756, %v782
          %v796 = vadd.f32 %v757, %v782
          %v797 = vadd.f32 %v758, %v782
          %v798 = vadd.f32 %v759, %v782
          %v799 = vadd.f32 %v760, %v782
          %v800 = vadd.f32 %v761, %v782
          %v801 = vadd.f32 %v762, %v782
          %v802 = vadd.f32 %v763, %v782
          %v803 = vadd.f32 %v764, %v782
          %v804 = vadd.f32 %v765, %v782
          %v805 = vadd.f32 %v766, %v782
          %v806 = vadd.f32 %v767, %v782
          %v807 = vadd.f32 %v768, %v782
          %v808 = vadd.f32 %v769, %v782
          %v809 = vadd.f32 %v770, %v782
          %v810 = vadd.f32 %v771, %v782
          %v811 = vadd.f32 %v772, %v782
          %v812 = vadd.f32 %v773, %v782
          %v813 = vadd.f32 %v774, %v782
          %v814 = vadd.f32 %v775, %v782
          %v815 = vadd.f32 %v776, %v782
          %v816 = vxor.u32 %v784, 2147483648
          %v817 = vxor.u32 %v785, 2147483648
          %v818 = vxor.u32 %v786, 2147483648
          %v819 = vxor.u32 %v787, 2147483648
          %v820 = vxor.u32 %v788, 2147483648
          %v821 = vxor.u32 %v789, 2147483648
          %v822 = vxor.u32 %v790, 2147483648
          %v823 = vxor.u32 %v791, 2147483648
          %v824 = vxor.u32 %v792, 2147483648
          %v825 = vxor.u32 %v793, 2147483648
          %v826 = vxor.u32 %v794, 2147483648
          %v827 = vxor.u32 %v795, 2147483648
          %v828 = vxor.u32 %v796, 2147483648
          %v829 = vxor.u32 %v797, 2147483648
          %v830 = vxor.u32 %v798, 2147483648
          %v831 = vxor.u32 %v799, 2147483648
          %v832 = vxor.u32 %v800, 2147483648
          %v833 = vxor.u32 %v801, 2147483648
          %v834 = vxor.u32 %v802, 2147483648
          %v835 = vxor.u32 %v803, 2147483648
          %v836 = vxor.u32 %v804, 2147483648
          %v837 = vxor.u32 %v805, 2147483648
          %v838 = vxor.u32 %v806, 2147483648
          %v839 = vxor.u32 %v807, 2147483648
          %v840 = vxor.u32 %v808, 2147483648
          %v841 = vxor.u32 %v809, 2147483648
          %v842 = vxor.u32 %v810, 2147483648
          %v843 = vxor.u32 %v811, 2147483648
          %v844 = vxor.u32 %v812, 2147483648
          %v845 = vxor.u32 %v813, 2147483648
          %v846 = vxor.u32 %v814, 2147483648
          %v847 = vxor.u32 %v815, 2147483648
          %v848 = vmul.f32 %v816, 1.442695
          %v849 = vpow.pop %v848
          %v850 = vmul.f32 %v817, 1.442695
          %v851 = vpow.pop %v850
          %v852 = vmul.f32 %v818, 1.442695
          %v853 = vpow.pop %v852
          %v854 = vmul.f32 %v819, 1.442695
          %v855 = vpow.pop %v854
          %v856 = vmul.f32 %v820, 1.442695
          %v857 = vpow.pop %v856
          %v858 = vmul.f32 %v821, 1.442695
          %v859 = vpow.pop %v858
          %v860 = vmul.f32 %v822, 1.442695
          %v861 = vpow.pop %v860
          %v862 = vmul.f32 %v823, 1.442695
          %v863 = vpow.pop %v862
          %v864 = vmul.f32 %v824, 1.442695
          %v865 = vpow.pop %v864
          %v866 = vmul.f32 %v825, 1.442695
          %v867 = vpow.pop %v866
          %v868 = vmul.f32 %v826, 1.442695
          %v869 = vpow.pop %v868
          %v870 = vmul.f32 %v827, 1.442695
          %v871 = vpow.pop %v870
          %v872 = vmul.f32 %v828, 1.442695
          %v873 = vpow.pop %v872
          %v874 = vmul.f32 %v829, 1.442695
          %v875 = vpow.pop %v874
          %v876 = vmul.f32 %v830, 1.442695
          %v877 = vpow.pop %v876
          %v878 = vmul.f32 %v831, 1.442695
          %v879 = vpow.pop %v878
          %v880 = vmul.f32 %v832, 1.442695
          %v881 = vpow.pop %v880
          %v882 = vmul.f32 %v833, 1.442695
          %v883 = vpow.pop %v882
          %v884 = vmul.f32 %v834, 1.442695
          %v885 = vpow.pop %v884
          %v886 = vmul.f32 %v835, 1.442695
          %v887 = vpow.pop %v886
          %v888 = vmul.f32 %v836, 1.442695
          %v889 = vpow.pop %v888
          %v890 = vmul.f32 %v837, 1.442695
          %v891 = vpow.pop %v890
          %v892 = vmul.f32 %v838, 1.442695
          %v893 = vpow.pop %v892
          %v894 = vmul.f32 %v839, 1.442695
          %v895 = vpow.pop %v894
          %v896 = vmul.f32 %v840, 1.442695
          %v897 = vpow.pop %v896
          %v898 = vmul.f32 %v841, 1.442695
          %v899 = vpow.pop %v898
          %v900 = vmul.f32 %v842, 1.442695
          %v901 = vpow.pop %v900
          %v902 = vmul.f32 %v843, 1.442695
          %v903 = vpow.pop %v902
          %v904 = vmul.f32 %v844, 1.442695
          %v905 = vpow.pop %v904
          %v906 = vmul.f32 %v845, 1.442695
          %v907 = vpow.pop %v906
          %v908 = vmul.f32 %v846, 1.442695
          %v909 = vpow.pop %v908
          %v910 = vmul.f32 %v847, 1.442695
          %v911 = vpow.pop %v910
          %v912 = vadd.f32 %v849, 1.0
          %v913 = vadd.f32 %v851, 1.0
          %v914 = vadd.f32 %v853, 1.0
          %v915 = vadd.f32 %v855, 1.0
          %v916 = vadd.f32 %v857, 1.0
          %v917 = vadd.f32 %v859, 1.0
          %v918 = vadd.f32 %v861, 1.0
          %v919 = vadd.f32 %v863, 1.0
          %v920 = vadd.f32 %v865, 1.0
          %v921 = vadd.f32 %v867, 1.0
          %v922 = vadd.f32 %v869, 1.0
          %v923 = vadd.f32 %v871, 1.0
          %v924 = vadd.f32 %v873, 1.0
          %v925 = vadd.f32 %v875, 1.0
          %v926 = vadd.f32 %v877, 1.0
          %v927 = vadd.f32 %v879, 1.0
          %v928 = vadd.f32 %v881, 1.0
          %v929 = vadd.f32 %v883, 1.0
          %v930 = vadd.f32 %v885, 1.0
          %v931 = vadd.f32 %v887, 1.0
          %v932 = vadd.f32 %v889, 1.0
          %v933 = vadd.f32 %v891, 1.0
          %v934 = vadd.f32 %v893, 1.0
          %v935 = vadd.f32 %v895, 1.0
          %v936 = vadd.f32 %v897, 1.0
          %v937 = vadd.f32 %v899, 1.0
          %v938 = vadd.f32 %v901, 1.0
          %v939 = vadd.f32 %v903, 1.0
          %v940 = vadd.f32 %v905, 1.0
          %v941 = vadd.f32 %v907, 1.0
          %v942 = vadd.f32 %v909, 1.0
          %v943 = vadd.f32 %v911, 1.0
          %v944 = vrcp.pop %v912
          %v945 = vmul.f32 1.0, %v944
          %v946 = vrcp.pop %v913
          %v947 = vmul.f32 1.0, %v946
          %v948 = vrcp.pop %v914
          %v949 = vmul.f32 1.0, %v948
          %v950 = vrcp.pop %v915
          %v951 = vmul.f32 1.0, %v950
          %v952 = vrcp.pop %v916
          %v953 = vmul.f32 1.0, %v952
          %v954 = vrcp.pop %v917
          %v955 = vmul.f32 1.0, %v954
          %v956 = vrcp.pop %v918
          %v957 = vmul.f32 1.0, %v956
          %v958 = vrcp.pop %v919
          %v959 = vmul.f32 1.0, %v958
          %v960 = vrcp.pop %v920
          %v961 = vmul.f32 1.0, %v960
          %v962 = vrcp.pop %v921
          %v963 = vmul.f32 1.0, %v962
          %v964 = vrcp.pop %v922
          %v965 = vmul.f32 1.0, %v964
          %v966 = vrcp.pop %v923
          %v967 = vmul.f32 1.0, %v966
          %v968 = vrcp.pop %v924
          %v969 = vmul.f32 1.0, %v968
          %v970 = vrcp.pop %v925
          %v971 = vmul.f32 1.0, %v970
          %v972 = vrcp.pop %v926
          %v973 = vmul.f32 1.0, %v972
          %v974 = vrcp.pop %v927
          %v975 = vmul.f32 1.0, %v974
          %v976 = vrcp.pop %v928
          %v977 = vmul.f32 1.0, %v976
          %v978 = vrcp.pop %v929
          %v979 = vmul.f32 1.0, %v978
          %v980 = vrcp.pop %v930
          %v981 = vmul.f32 1.0, %v980
          %v982 = vrcp.pop %v931
          %v983 = vmul.f32 1.0, %v982
          %v984 = vrcp.pop %v932
          %v985 = vmul.f32 1.0, %v984
          %v986 = vrcp.pop %v933
          %v987 = vmul.f32 1.0, %v986
          %v988 = vrcp.pop %v934
          %v989 = vmul.f32 1.0, %v988
          %v990 = vrcp.pop %v935
          %v991 = vmul.f32 1.0, %v990
          %v992 = vrcp.pop %v936
          %v993 = vmul.f32 1.0, %v992
          %v994 = vrcp.pop %v937
          %v995 = vmul.f32 1.0, %v994
          %v996 = vrcp.pop %v938
          %v997 = vmul.f32 1.0, %v996
          %v998 = vrcp.pop %v939
          %v999 = vmul.f32 1.0, %v998
          %v1000 = vrcp.pop %v940
          %v1001 = vmul.f32 1.0, %v1000
          %v1002 = vrcp.pop %v941
          %v1003 = vmul.f32 1.0, %v1002
          %v1004 = vrcp.pop %v942
          %v1005 = vmul.f32 1.0, %v1004
          %v1006 = vrcp.pop %v943
          %v1007 = vmul.f32 1.0, %v1006
          %v1008 = vmul.f32 %v784, %v945
          %v1009 = vmul.f32 %v785, %v947
          %v1010 = vmul.f32 %v786, %v949
          %v1011 = vmul.f32 %v787, %v951
          %v1012 = vmul.f32 %v788, %v953
          %v1013 = vmul.f32 %v789, %v955
          %v1014 = vmul.f32 %v790, %v957
          %v1015 = vmul.f32 %v791, %v959
          %v1016 = vmul.f32 %v792, %v961
          %v1017 = vmul.f32 %v793, %v963
          %v1018 = vmul.f32 %v794, %v965
          %v1019 = vmul.f32 %v795, %v967
          %v1020 = vmul.f32 %v796, %v969
          %v1021 = vmul.f32 %v797, %v971
          %v1022 = vmul.f32 %v798, %v973
          %v1023 = vmul.f32 %v799, %v975
          %v1024 = vmul.f32 %v800, %v977
          %v1025 = vmul.f32 %v801, %v979
          %v1026 = vmul.f32 %v802, %v981
          %v1027 = vmul.f32 %v803, %v983
          %v1028 = vmul.f32 %v804, %v985
          %v1029 = vmul.f32 %v805, %v987
          %v1030 = vmul.f32 %v806, %v989
          %v1031 = vmul.f32 %v807, %v991
          %v1032 = vmul.f32 %v808, %v993
          %v1033 = vmul.f32 %v809, %v995
          %v1034 = vmul.f32 %v810, %v997
          %v1035 = vmul.f32 %v811, %v999
          %v1036 = vmul.f32 %v812, %v1001
          %v1037 = vmul.f32 %v813, %v1003
          %v1038 = vmul.f32 %v814, %v1005
          %v1039 = vmul.f32 %v815, %v1007
          %1040 = vst [vmem:[%s249] sm:$0xff] %v1008
          %1041 = vst [vmem:[%s249 + $0x8] sm:$0xff] %v1009
          %1042 = vst [vmem:[%s249 + $0x10] sm:$0xff] %v1010
          %1043 = vst [vmem:[%s249 + $0x18] sm:$0xff] %v1011
          %1044 = vst [vmem:[%s249 + $0x20] sm:$0xff] %v1012
          %1045 = vst [vmem:[%s249 + $0x28] sm:$0xff] %v1013
          %1046 = vst [vmem:[%s249 + $0x30] sm:$0xff] %v1014
          %1047 = vst [vmem:[%s249 + $0x38] sm:$0xff] %v1015
          %1048 = vst [vmem:[%s249 + $0x40] sm:$0xff] %v1016
          %1049 = vst [vmem:[%s249 + $0x48] sm:$0xff] %v1017
          %1050 = vst [vmem:[%s249 + $0x50] sm:$0xff] %v1018
          %1051 = vst [vmem:[%s249 + $0x58] sm:$0xff] %v1019
          %1052 = vst [vmem:[%s249 + $0x60] sm:$0xff] %v1020
          %1053 = vst [vmem:[%s249 + $0x68] sm:$0xff] %v1021
          %1054 = vst [vmem:[%s249 + $0x70] sm:$0xff] %v1022
          %1055 = vst [vmem:[%s249 + $0x78] sm:$0xff] %v1023
          %1056 = vst [vmem:[%s249 + $0x80] sm:$0xff] %v1024
          %1057 = vst [vmem:[%s249 + $0x88] sm:$0xff] %v1025
          %1058 = vst [vmem:[%s249 + $0x90] sm:$0xff] %v1026
          %1059 = vst [vmem:[%s249 + $0x98] sm:$0xff] %v1027
          %1060 = vst [vmem:[%s249 + $0xa0] sm:$0xff] %v1028
          %1061 = vst [vmem:[%s249 + $0xa8] sm:$0xff] %v1029
          %1062 = vst [vmem:[%s249 + $0xb0] sm:$0xff] %v1030
          %1063 = vst [vmem:[%s249 + $0xb8] sm:$0xff] %v1031
          %1064 = vst [vmem:[%s249 + $0xc0] sm:$0xff] %v1032
          %1065 = vst [vmem:[%s249 + $0xc8] sm:$0xff] %v1033
          %1066 = vst [vmem:[%s249 + $0xd0] sm:$0xff] %v1034
          %1067 = vst [vmem:[%s249 + $0xd8] sm:$0xff] %v1035
          %1068 = vst [vmem:[%s249 + $0xe0] sm:$0xff] %v1036
          %1069 = vst [vmem:[%s249 + $0xe8] sm:$0xff] %v1037
          %1070 = vst [vmem:[%s249 + $0xf0] sm:$0xff] %v1038
          %1071 = vst [vmem:[%s249 + $0xf8] sm:$0xff] %v1039
        $region48: #{tpu_custom_call.1} parent=31 // pred_fallthru
          _
        %s1072 = sand.u32 %s132, 1
        %s1073 = scalar_lea.sflag [#allocation5], %s1072
        %s1074 = sand.u32 %s132, 1
        %s1075 = smul.addr %s1074, 256
        %s1076 = scalar_lea.vmem [#allocation8], %s1075
        // Predicated region
        $region49: #{tpu_custom_call.1} parent=31 // pred_check
          %p1077 = pneg %p142
        $region50: #{tpu_custom_call.1} parent=31 // pred_check_branch
          %1079 = sbr.rel (%p1077) target = $region52
        $region51: #{tpu_custom_call.1} parent=31 // pred_region
          %s1080 = smul.u32 32, %s26
          %s1082 = ssub.s32 4096, 4096
          %1083 = vsyncadd %s1073, %s1082
          %s1084 = sadd.s32 %s27, %s1080
          %s1085 = smul.addr %s1084, 128
          %s1086 = scalar_lea.hbm %s3, %s1085
          %s1087 = sshll.u32 %s1076, 4
          %s1088 = int_to_ptr.vmem [resolvable:$true] %s1087
          %1093 = dma.vmem_to_hbm [thread:$0]  %s1088, 4096, %s1086, %s1073, 128, 128, 8
        $region52: #{tpu_custom_call.1} parent=31 // pred_fallthru
          _
      $region32: #{tpu_custom_call.1} parent=5 // pred_fallthru
        _
      %p1094 = scmp.le.s32.totalorder 2, %s16
      // Predicated region
      $region53: #{tpu_custom_call.1} parent=5 // pred_check
        %p1095 = pneg %p1094
      $region54: #{tpu_custom_call.1} parent=5 // pred_check_branch
        %1097 = sbr.rel (%p1095) target = $region56
      $region55: #{tpu_custom_call.1} parent=5 // pred_region
        %s1098 = ssub.s32 %s16, 2
        // Predicated region
        $region57: #{tpu_custom_call.1} parent=55 // pred_check
          %p1099 = pneg %p148
        $region58: #{tpu_custom_call.1} parent=55 // pred_check_branch
          %1101 = sbr.rel (%p1099) target = $region60
        $region59: #{tpu_custom_call.1} parent=55 // pred_region
          %s1102 = sand.u32 %s133, 1
          %s1103 = scalar_lea.sflag [#allocation5], %s1102
          %s1104 = sand.u32 %s133, 1
          %s1105 = smul.addr %s1104, 256
          %s1106 = scalar_lea.vmem [#allocation8], %s1105
          %1107 = dma.done %s1103, 4096
        $region60: #{tpu_custom_call.1} parent=55 // pred_fallthru
          _
      $region56: #{tpu_custom_call.1} parent=5 // pred_fallthru
        _
    $region6: #{tpu_custom_call.1} parent=1 // loop_footer
      %s20 = sadd.s32 1, %s16
    $region7: #{tpu_custom_call.1} parent=1 // loop_footer_branch
      %15 = sbr.rel target = $region3
    $region8: #{tpu_custom_call.1} parent=1 // loop_exit
      _
    %1108 = vsyncpa [#allocation4], 1
    %s1109 = scalar_lea.sflag [#allocation4], 1
    %1110 = vsyncpa %s1109, 1
    %1111 = vsyncpa [#allocation7], 1
    %1112 = vsyncpa [#allocation5], 1
    %s1113 = scalar_lea.sflag [#allocation5], 1
    %1114 = vsyncpa %s1113, 1

</llo_original>
